<compile_context>
chip_gen: v5e
topology: v5e:2x2
jax: 0.10.0
libtpu: 0.0.40
codegen_flags: <defaults>
</compile_context>

<pallas_src>
import functools
import math

import jax
import jax.numpy as jnp
from jax.experimental import pallas as pl
from jax.experimental.pallas import tpu as pltpu

LAYERS = [32, 128, 512, 128, 32]
LANE = 128

# Static column offsets inside the packed slabs.
# wslab = [ w1 (128x128) | w2 (128x512) | w4 (128x128) | w_head (128x256) ]
_W1_OFF, _W2_OFF, _W4_OFF, _WH_OFF = 0, 128, 640, 768
# bias slab = [ b1(128) | b2(512) | b3(128) | b4(128) | b_head(256) ]
_B1_OFF, _B2_OFF, _B3_OFF, _B4_OFF, _BH_OFF = 0, 128, 640, 768, 896


def _round_up(x, m):
    return ((x + m - 1) // m) * m


def _pad2d(a, rows, cols):
    return jnp.pad(a, ((0, rows - a.shape[0]), (0, cols - a.shape[1])))


# ----------------------------------------------------------------------------
# Kernel
# ----------------------------------------------------------------------------
def actor_kernel(x_ref, w0_ref, wslab_ref, w3_ref, bias_ref, mu_ref, std_ref):
    def dense_relu(h_bf16, w, b):
        acc = jnp.dot(h_bf16, w, preferred_element_type=jnp.float32)
        if b is not None:
            acc = acc + b
        # Carry activations in bf16 (next matmul wants bf16 anyway).
        return jnp.maximum(acc, 0.0).astype(jnp.bfloat16)

    h = dense_relu(x_ref[...].astype(jnp.bfloat16), w0_ref[...], None)  # bias=False
    h = dense_relu(h, wslab_ref[:, _W1_OFF:_W1_OFF + 128],
                   bias_ref[:, _B1_OFF:_B1_OFF + 128])
    h = dense_relu(h, wslab_ref[:, _W2_OFF:_W2_OFF + 512],
                   bias_ref[:, _B2_OFF:_B2_OFF + 512])
    h = dense_relu(h, w3_ref[...],
                   bias_ref[:, _B3_OFF:_B3_OFF + 128])
    h = dense_relu(h, wslab_ref[:, _W4_OFF:_W4_OFF + 128],
                   bias_ref[:, _B4_OFF:_B4_OFF + 128])

    # Fused mu / log_std head: one (tb,128)@(128,256) MXU matmul.
    head = (jnp.dot(h, wslab_ref[:, _WH_OFF:_WH_OFF + 256],
                    preferred_element_type=jnp.float32)
            + bias_ref[:, _BH_OFF:_BH_OFF + 256])
    mu_ref[...] = head[:, :128]                       # 128-lane aligned slices
    std_ref[...] = jnp.exp(jnp.tanh(head[:, 128:]))


# ----------------------------------------------------------------------------
# Parameters
# ----------------------------------------------------------------------------
def init_params(key, input_size, output_size):
    """PyTorch-Linear-style init (U(-1/sqrt(fan_in), 1/sqrt(fan_in)));
    weights already transposed to [fan_in, fan_out]."""
    dims = [input_size] + LAYERS + [2 * output_size]
    params = []
    for i in range(len(dims) - 1):
        fan_in, fan_out = dims[i], dims[i + 1]
        bound = 1.0 / math.sqrt(fan_in)
        key, kw, kb = jax.random.split(key, 3)
        w = jax.random.uniform(kw, (fan_in, fan_out), jnp.float32, -bound, bound)
        if i == 0:
            params.append((w, None))  # first layer has bias=False
        else:
            b = jax.random.uniform(kb, (1, fan_out), jnp.float32, -bound, bound)
            params.append((w, b))
    return params


def prepare_kernel_params(params, input_size, output_size):
    """ONE-TIME prep (call at init, NOT per forward): zero-pad sub-128 feature
    dims, cast weights to bf16, fuse the mu/log_std head, and pack everything
    into 4 slabs so the kernel has few, large DMA inputs."""
    assert _round_up(output_size, LANE) == LANE, "head packing assumes output_size <= 128"
    (w0, _), (w1, b1), (w2, b2), (w3, b3), (w4, b4), (wh, bh) = params

    # w0: (F, 32) -> (F, 128); fan_in kept at natural width (no padded x copy).
    w0p = _pad2d(w0, input_size, LANE).astype(jnp.bfloat16)
    w1p = _pad2d(w1, LANE, LANE).astype(jnp.bfloat16)     # (32,128) -> (128,128)
    w2p = w2.astype(jnp.bfloat16)                         # (128,512)
    w3p = w3.astype(jnp.bfloat16)                         # (512,128)
    w4p = _pad2d(w4, LANE, LANE).astype(jnp.bfloat16)     # (128,32) -> (128,128)
    # Head split into lane-aligned mu / log_std halves, then fused into one
    # (128, 256) weight so the tail is a single MXU matmul.
    wh_mu = _pad2d(wh[:, :output_size], LANE, LANE)
    wh_sd = _pad2d(wh[:, output_size:], LANE, LANE)
    whp = jnp.concatenate([wh_mu, wh_sd], axis=1).astype(jnp.bfloat16)   # (128,256)

    wslab = jnp.concatenate([w1p, w2p, w4p, whp], axis=1)  # (128, 1024) bf16

    b1p = b1.astype(jnp.float32)                           # (1,128)
    b2p = b2.astype(jnp.float32)                           # (1,512)
    b3p = b3.astype(jnp.float32)                           # (1,128)
    b4p = _pad2d(b4, 1, LANE).astype(jnp.float32)          # (1,32) -> (1,128)
    bh_mu = _pad2d(bh[:, :output_size], 1, LANE)
    bh_sd = _pad2d(bh[:, output_size:], 1, LANE)
    bhp = jnp.concatenate([bh_mu, bh_sd], axis=1).astype(jnp.float32)    # (1,256)
    bias = jnp.concatenate([b1p, b2p, b3p, b4p, bhp], axis=1)            # (1,1152)

    return (w0p, wslab, w3p, bias)


# ----------------------------------------------------------------------------
# Forward wrapper
# ----------------------------------------------------------------------------
def _choose_tile_b(B, cap):
    if B <= 16:
        return max(8, _round_up(B, 8))              # single grid step for tiny B
    # >=2 grid steps so ("parallel",) shards the batch across v7x's two
    # TensorCores; cap the tile so it fits v7x's 64 MiB VMEM.
    return max(8, min(cap, _round_up(pl.cdiv(B, 2), 8)))


@functools.partial(jax.jit, static_argnames=("output_size", "tile_b_cap"))
def actor_forward(x, prepared, output_size, tile_b_cap=2048):
    """x: [B, input_size] float32 (already flattened). Returns (mu, std)."""
    w0, wslab, w3, bias = prepared
    B, F = x.shape
    assert F == w0.shape[0]
    out_pad = LANE

    tile_b = _choose_tile_b(B, tile_b_cap)
    b_pad = _round_up(B, tile_b)
    x_p = x.astype(jnp.float32)
    if b_pad != B:                                   # pad batch only if needed
        x_p = jnp.pad(x_p, ((0, b_pad - B), (0, 0)))

    grid = (b_pad // tile_b,)
    const = lambda i: (0, 0)
    in_specs = [
        pl.BlockSpec((tile_b, F), lambda i: (i, 0)),   # x at natural lane width
        pl.BlockSpec(w0.shape, const),                 # VMEM-resident weights
        pl.BlockSpec(wslab.shape, const),
        pl.BlockSpec(w3.shape, const),
        pl.BlockSpec(bias.shape, const),
    ]
    out_spec = pl.BlockSpec((tile_b, out_pad), lambda i: (i, 0))

    # Advisory cost estimate so XLA can schedule around this small call.
    flops = int(2 * b_pad * (F * 128 + 128 * 128 + 128 * 512 + 512 * 128
                             + 128 * 128 + 128 * 256))
    bytes_accessed = int(x_p.size * 4
                         + sum(int(a.size) * a.dtype.itemsize
                               for a in (w0, wslab, w3, bias))
                         + 2 * b_pad * out_pad * 4)
    cost = pl.CostEstimate(flops=flops,
                           transcendentals=int(2 * b_pad * out_pad),
                           bytes_accessed=bytes_accessed)

    mu_p, std_p = pl.pallas_call(
        actor_kernel,
        out_shape=(jax.ShapeDtypeStruct((b_pad, out_pad), jnp.float32),
                   jax.ShapeDtypeStruct((b_pad, out_pad), jnp.float32)),
        grid_spec=pltpu.PrefetchScalarGridSpec(
            num_scalar_prefetch=0,
            grid=grid,
            in_specs=in_specs,
            out_specs=(out_spec, out_spec),
        ),
        compiler_params=pltpu.CompilerParams(
            dimension_semantics=("parallel",),          # both TCs on v7x
            vmem_limit_bytes=48 * 1024 * 1024),         # headroom for big tiles
        cost_estimate=cost,
    )(x_p, w0, wslab, w3, bias)

    return mu_p[:B, :output_size], std_p[:B, :output_size]


# ----------------------------------------------------------------------------
# Pure-JAX f32 reference (matches the PyTorch module)
# ----------------------------------------------------------------------------
def reference_forward(x, params, output_size):
    h = x
    for i, (w, b) in enumerate(params):
        h = h @ w
        if b is not None:
            h = h + b
        if i < len(params) - 1:
            h = jnp.maximum(h, 0.0)
    mu = h[:, :output_size]
    std = jnp.exp(jnp.tanh(h[:, output_size:]))
    return mu, std


if __name__ == "__main__":
    key = jax.random.PRNGKey(0)
    B = 2
    # Input equivalent to an NCHW tensor [2, 4, 4, 4] flattened -> input_size = 64.
    C, H, W = 4, 4, 4
    input_size = C * H * W
    output_size = 8

    key, kx, kp = jax.random.split(key, 3)
    x_nchw = jax.random.normal(kx, (B, C, H, W), jnp.float32)
    x = x_nchw.reshape(B, -1)  # nn.Flatten()

    params = init_params(kp, input_size, output_size)
    # One-time parameter prep (padding / bf16 cast / slab packing) -- kept out
    # of the per-call hot path.
    prepared = prepare_kernel_params(params, input_size, output_size)
    prepared = jax.tree_util.tree_map(jax.block_until_ready, prepared)

    mu, std = actor_forward(x, prepared, output_size=output_size)
    mu = jax.block_until_ready(mu)
    std = jax.block_until_ready(std)

    # Sanity check vs pure-JAX f32 reference (bf16 matmul inputs -> loosened tol).
    mu_ref, std_ref = reference_forward(x, params, output_size)
    assert mu.shape == (B, output_size) and std.shape == (B, output_size)
    assert jnp.allclose(mu, mu_ref, atol=5e-2, rtol=5e-2)
    assert jnp.allclose(std, std_ref, atol=5e-2, rtol=5e-2)

    # TODO(synk): torch.distributions.Normal itself has no Pallas equivalent;
    # the kernel returns its (mu, std) parameters instead.
    print("KERNEL_OK")
</pallas_src>

<mosaic_0001>
module attributes {stable_mosaic.version = 11 : i64} {
  func.func @actor_kernel(%arg0: i32, %arg1: memref<8x64xf32, #tpu.memory_space<vmem>>, %arg2: memref<64x128xbf16, #tpu.memory_space<vmem>>, %arg3: memref<128x1024xbf16, #tpu.memory_space<vmem>>, %arg4: memref<512x128xbf16, #tpu.memory_space<vmem>>, %arg5: memref<1x1152xf32, #tpu.memory_space<vmem>>, %arg6: memref<8x128xf32, #tpu.memory_space<vmem>>, %arg7: memref<8x128xf32, #tpu.memory_space<vmem>>) attributes {dimension_semantics = [#tpu.dimension_semantics<parallel>], iteration_bounds = array<i64: 1>, scalar_prefetch = 0 : i64, scratch_operands = 0 : i64, tpu.core_type = #tpu.core_type<tc>, window_params = [{transform_indices = @transform_0, window_bounds = array<i64: 8, 64>}, {pipeline_mode = #tpu.pipeline_mode<synchronous>, transform_indices = @transform_1, window_bounds = array<i64: 64, 128>}, {pipeline_mode = #tpu.pipeline_mode<synchronous>, transform_indices = @transform_2, window_bounds = array<i64: 128, 1024>}, {pipeline_mode = #tpu.pipeline_mode<synchronous>, transform_indices = @transform_3, window_bounds = array<i64: 512, 128>}, {pipeline_mode = #tpu.pipeline_mode<synchronous>, transform_indices = @transform_4, window_bounds = array<i64: 1, 1152>}, {transform_indices = @transform_5, window_bounds = array<i64: 8, 128>}, {transform_indices = @transform_6, window_bounds = array<i64: 8, 128>}]} {
    %c0 = arith.constant 0 : index
    %c0_0 = arith.constant 0 : index
    %0 = vector.load %arg1[%c0, %c0_0] : memref<8x64xf32, #tpu.memory_space<vmem>>, vector<8x64xf32>
    %1 = arith.truncf %0 : vector<8x64xf32> to vector<8x64xbf16>
    %c0_1 = arith.constant 0 : index
    %c0_2 = arith.constant 0 : index
    %2 = vector.load %arg2[%c0_1, %c0_2] : memref<64x128xbf16, #tpu.memory_space<vmem>>, vector<64x128xbf16>
    %cst = arith.constant dense<0.000000e+00> : vector<8x128xf32>
    %3 = tpu.matmul %1, %2, %cst {dimension_numbers = #tpu.dot_dimension_numbers<[1], [0], [0], [1], [0, 0, 1, 1], [], []>} : vector<8x64xbf16>, vector<64x128xbf16>, vector<8x128xf32> -> vector<8x128xf32>
    %cst_3 = arith.constant 0.000000e+00 : f32
    %4 = vector.broadcast %cst_3 : f32 to vector<8x128xf32>
    %5 = arith.maximumf %3, %4 : vector<8x128xf32>
    %6 = arith.truncf %5 : vector<8x128xf32> to vector<8x128xbf16>
    %c0_4 = arith.constant 0 : index
    %c0_5 = arith.constant 0 : index
    %7 = vector.load %arg3[%c0_4, %c0_5] : memref<128x1024xbf16, #tpu.memory_space<vmem>>, vector<128x128xbf16>
    %c0_6 = arith.constant 0 : index
    %c0_7 = arith.constant 0 : index
    %8 = vector.load %arg5[%c0_6, %c0_7] : memref<1x1152xf32, #tpu.memory_space<vmem>>, vector<1x128xf32>
    %cst_8 = arith.constant dense<0.000000e+00> : vector<8x128xf32>
    %9 = tpu.matmul %6, %7, %cst_8 {dimension_numbers = #tpu.dot_dimension_numbers<[1], [0], [0], [1], [0, 0, 1, 1], [], []>} : vector<8x128xbf16>, vector<128x128xbf16>, vector<8x128xf32> -> vector<8x128xf32>
    %10 = vector.broadcast %8 : vector<1x128xf32> to vector<8x128xf32>
    %11 = arith.addf %9, %10 : vector<8x128xf32>
    %cst_9 = arith.constant 0.000000e+00 : f32
    %12 = vector.broadcast %cst_9 : f32 to vector<8x128xf32>
    %13 = arith.maximumf %11, %12 : vector<8x128xf32>
    %14 = arith.truncf %13 : vector<8x128xf32> to vector<8x128xbf16>
    %c0_10 = arith.constant 0 : index
    %c128 = arith.constant 128 : index
    %15 = vector.load %arg3[%c0_10, %c128] : memref<128x1024xbf16, #tpu.memory_space<vmem>>, vector<128x512xbf16>
    %c0_11 = arith.constant 0 : index
    %c128_12 = arith.constant 128 : index
    %16 = vector.load %arg5[%c0_11, %c128_12] : memref<1x1152xf32, #tpu.memory_space<vmem>>, vector<1x512xf32>
    %cst_13 = arith.constant dense<0.000000e+00> : vector<8x512xf32>
    %17 = tpu.matmul %14, %15, %cst_13 {dimension_numbers = #tpu.dot_dimension_numbers<[1], [0], [0], [1], [0, 0, 1, 1], [], []>} : vector<8x128xbf16>, vector<128x512xbf16>, vector<8x512xf32> -> vector<8x512xf32>
    %18 = vector.broadcast %16 : vector<1x512xf32> to vector<8x512xf32>
    %19 = arith.addf %17, %18 : vector<8x512xf32>
    %cst_14 = arith.constant 0.000000e+00 : f32
    %20 = vector.broadcast %cst_14 : f32 to vector<8x512xf32>
    %21 = arith.maximumf %19, %20 : vector<8x512xf32>
    %22 = arith.truncf %21 : vector<8x512xf32> to vector<8x512xbf16>
    %c0_15 = arith.constant 0 : index
    %c0_16 = arith.constant 0 : index
    %23 = vector.load %arg4[%c0_15, %c0_16] : memref<512x128xbf16, #tpu.memory_space<vmem>>, vector<512x128xbf16>
    %c0_17 = arith.constant 0 : index
    %c640 = arith.constant 640 : index
    %24 = vector.load %arg5[%c0_17, %c640] : memref<1x1152xf32, #tpu.memory_space<vmem>>, vector<1x128xf32>
    %cst_18 = arith.constant dense<0.000000e+00> : vector<8x128xf32>
    %25 = tpu.matmul %22, %23, %cst_18 {dimension_numbers = #tpu.dot_dimension_numbers<[1], [0], [0], [1], [0, 0, 1, 1], [], []>} : vector<8x512xbf16>, vector<512x128xbf16>, vector<8x128xf32> -> vector<8x128xf32>
    %26 = vector.broadcast %24 : vector<1x128xf32> to vector<8x128xf32>
    %27 = arith.addf %25, %26 : vector<8x128xf32>
    %cst_19 = arith.constant 0.000000e+00 : f32
    %28 = vector.broadcast %cst_19 : f32 to vector<8x128xf32>
    %29 = arith.maximumf %27, %28 : vector<8x128xf32>
    %30 = arith.truncf %29 : vector<8x128xf32> to vector<8x128xbf16>
    %c0_20 = arith.constant 0 : index
    %c640_21 = arith.constant 640 : index
    %31 = vector.load %arg3[%c0_20, %c640_21] : memref<128x1024xbf16, #tpu.memory_space<vmem>>, vector<128x128xbf16>
    %c0_22 = arith.constant 0 : index
    %c768 = arith.constant 768 : index
    %32 = vector.load %arg5[%c0_22, %c768] : memref<1x1152xf32, #tpu.memory_space<vmem>>, vector<1x128xf32>
    %cst_23 = arith.constant dense<0.000000e+00> : vector<8x128xf32>
    %33 = tpu.matmul %30, %31, %cst_23 {dimension_numbers = #tpu.dot_dimension_numbers<[1], [0], [0], [1], [0, 0, 1, 1], [], []>} : vector<8x128xbf16>, vector<128x128xbf16>, vector<8x128xf32> -> vector<8x128xf32>
    %34 = vector.broadcast %32 : vector<1x128xf32> to vector<8x128xf32>
    %35 = arith.addf %33, %34 : vector<8x128xf32>
    %cst_24 = arith.constant 0.000000e+00 : f32
    %36 = vector.broadcast %cst_24 : f32 to vector<8x128xf32>
    %37 = arith.maximumf %35, %36 : vector<8x128xf32>
    %38 = arith.truncf %37 : vector<8x128xf32> to vector<8x128xbf16>
    %c0_25 = arith.constant 0 : index
    %c768_26 = arith.constant 768 : index
    %39 = vector.load %arg3[%c0_25, %c768_26] : memref<128x1024xbf16, #tpu.memory_space<vmem>>, vector<128x256xbf16>
    %cst_27 = arith.constant dense<0.000000e+00> : vector<8x256xf32>
    %40 = tpu.matmul %38, %39, %cst_27 {dimension_numbers = #tpu.dot_dimension_numbers<[1], [0], [0], [1], [0, 0, 1, 1], [], []>} : vector<8x128xbf16>, vector<128x256xbf16>, vector<8x256xf32> -> vector<8x256xf32>
    %c0_28 = arith.constant 0 : index
    %c896 = arith.constant 896 : index
    %41 = vector.load %arg5[%c0_28, %c896] : memref<1x1152xf32, #tpu.memory_space<vmem>>, vector<1x256xf32>
    %42 = vector.broadcast %41 : vector<1x256xf32> to vector<8x256xf32>
    %43 = arith.addf %40, %42 : vector<8x256xf32>
    %44 = vector.extract_strided_slice %43 {offsets = [0, 0], sizes = [8, 128], strides = [1, 1]} : vector<8x256xf32> to vector<8x128xf32>
    %c0_29 = arith.constant 0 : index
    %c0_30 = arith.constant 0 : index
    %45 = vector.load %arg6[%c0_29, %c0_30] : memref<8x128xf32, #tpu.memory_space<vmem>>, vector<8x128xf32>
    tpu.vector_store %arg6[%c0_29, %c0_30], %44 {strides = array<i32>} : memref<8x128xf32, #tpu.memory_space<vmem>>, vector<8x128xf32>,
    %46 = vector.extract_strided_slice %43 {offsets = [0, 128], sizes = [8, 128], strides = [1, 1]} : vector<8x256xf32> to vector<8x128xf32>
    %47 = math.tanh %46 : vector<8x128xf32>
    %48 = math.exp %47 : vector<8x128xf32>
    %c0_31 = arith.constant 0 : index
    %c0_32 = arith.constant 0 : index
    %49 = vector.load %arg7[%c0_31, %c0_32] : memref<8x128xf32, #tpu.memory_space<vmem>>, vector<8x128xf32>
    tpu.vector_store %arg7[%c0_31, %c0_32], %48 {strides = array<i32>} : memref<8x128xf32, #tpu.memory_space<vmem>>, vector<8x128xf32>,
    return
  }
  func.func @transform_0(%arg0: i32) -> (i32, i32) {
    %c0_i32 = arith.constant 0 : i32
    %c0_i32_0 = arith.constant 0 : i32
    return %arg0, %c0_i32 : i32, i32
  }
  func.func @transform_1(%arg0: i32) -> (i32, i32) {
    %c0_i32 = arith.constant 0 : i32
    %c0_i32_0 = arith.constant 0 : i32
    %c0_i32_1 = arith.constant 0 : i32
    return %c0_i32, %c0_i32_0 : i32, i32
  }
  func.func @transform_2(%arg0: i32) -> (i32, i32) {
    %c0_i32 = arith.constant 0 : i32
    %c0_i32_0 = arith.constant 0 : i32
    %c0_i32_1 = arith.constant 0 : i32
    return %c0_i32, %c0_i32_0 : i32, i32
  }
  func.func @transform_3(%arg0: i32) -> (i32, i32) {
    %c0_i32 = arith.constant 0 : i32
    %c0_i32_0 = arith.constant 0 : i32
    %c0_i32_1 = arith.constant 0 : i32
    return %c0_i32, %c0_i32_0 : i32, i32
  }
  func.func @transform_4(%arg0: i32) -> (i32, i32) {
    %c0_i32 = arith.constant 0 : i32
    %c0_i32_0 = arith.constant 0 : i32
    %c0_i32_1 = arith.constant 0 : i32
    return %c0_i32, %c0_i32_0 : i32, i32
  }
  func.func @transform_5(%arg0: i32) -> (i32, i32) {
    %c0_i32 = arith.constant 0 : i32
    %c0_i32_0 = arith.constant 0 : i32
    return %arg0, %c0_i32 : i32, i32
  }
  func.func @transform_6(%arg0: i32) -> (i32, i32) {
    %c0_i32 = arith.constant 0 : i32
    %c0_i32_0 = arith.constant 0 : i32
    return %arg0, %c0_i32 : i32, i32
  }
}

</mosaic_0001>

<llo_original>
// kernel: actor_forward.1
$region0: #{actor_forward.1}
  #allocation0 [shape = 'u32[]', space=smem, size = 0x4, offset = 0x4, fixed_abs, tag = 'smem constant byte address 0x4 - core index']
  #allocation1 [shape = 'u32[72,128]{1,0:T(1,128)}', space=vmem, size = 0x9000, scoped, tag = 'internal scratch']
  %s0 = inlined_call_operand.vmem [shape: f32[8,64], index: 0, kind: input, shape index: {}]
  %s1 = inlined_call_operand.hbm [shape: bf16[64,128], index: 1, kind: input, shape index: {}]
  %s2 = inlined_call_operand.hbm [shape: bf16[128,1024], index: 2, kind: input, shape index: {}]
  %s3 = inlined_call_operand.hbm [shape: bf16[512,128], index: 3, kind: input, shape index: {}]
  %s4 = inlined_call_operand.vmem [shape: f32[1,1152], index: 4, kind: input, shape index: {}]
  %s5 = inlined_call_operand.vmem [shape: f32[8,128], index: 5, kind: output, shape index: {0}]
  %s6 = inlined_call_operand.vmem [shape: f32[8,128], index: 6, kind: output, shape index: {1}]
  %7 = xla_tuple %s5, %s6
  %s8 = sld [smem:[#allocation0]]
  $region50: #{actor_forward.1} parent=0
    _
  %s10 = ssub.s32 1, %s8
  %s11 = scalar_select 0, %s10, %s8
  $region1: #{actor_forward.1} parent=0
    #allocation2 [shape = 'u8[16384]{0}', space=vmem, size = 0x4000, scoped, tag = 'input window, operand 1, single buffered']
    #allocation3 [shape = 's32[1]{0}', space=sflag, size = 0x4, scoped, tag = 'scoped memory for actor_forward.1']
    #allocation4 [shape = 'u8[262144]{0}', space=vmem, size = 0x40000, scoped, tag = 'input window, operand 2, single buffered']
    #allocation5 [shape = 's32[1]{0}', space=sflag, size = 0x4, scoped, tag = 'scoped memory for actor_forward.1']
    #allocation6 [shape = 'u8[131072]{0}', space=vmem, size = 0x20000, scoped, tag = 'input window, operand 3, single buffered']
    %12 = vsyncpa [#allocation3], 0
    %13 = vsyncpa [#allocation5], 0
    // Predicated region
    $region2: #{actor_forward.1} parent=1 // pred_check
      _
    $region3: #{actor_forward.1} parent=1 // pred_check_branch
      %15 = sbr.rel (0) target = $region5
    $region4: #{actor_forward.1} parent=1 // pred_region
      _
    $region5: #{actor_forward.1} parent=1 // pred_fallthru
      _
    // Predicated region
    $region6: #{actor_forward.1} parent=1 // pred_check
      _
    $region7: #{actor_forward.1} parent=1 // pred_check_branch
      %17 = sbr.rel (0) target = $region9
    $region8: #{actor_forward.1} parent=1 // pred_region
      %19 = vsyncadd [#allocation3], 0
      %s20 = sshll.u32 %s1, 4
      %s21 = int_to_ptr.hbm [resolvable:$true] %s20
      %s22 = sshll.u32 [#allocation2], 4
      %s23 = int_to_ptr.vmem [resolvable:$true] %s22
      %28 = dma.hbm_to_vmem [thread:$0]  %s21, 512, %s23, [#allocation3], 64, 64, 4
    $region9: #{actor_forward.1} parent=1 // pred_fallthru
      _
    // Predicated region
    $region10: #{actor_forward.1} parent=1 // pred_check
      _
    $region11: #{actor_forward.1} parent=1 // pred_check_branch
      %30 = sbr.rel (0) target = $region13
    $region12: #{actor_forward.1} parent=1 // pred_region
      %32 = vsyncadd [#allocation5], 0
      %s33 = sshll.u32 %s2, 4
      %s34 = int_to_ptr.hbm [resolvable:$true] %s33
      %s35 = sshll.u32 [#allocation4], 4
      %s36 = int_to_ptr.vmem [resolvable:$true] %s35
      %41 = dma.hbm_to_vmem [thread:$0]  %s34, 8192, %s36, [#allocation5], 512, 512, 32
    $region13: #{actor_forward.1} parent=1 // pred_fallthru
      _
    // Predicated region
    $region14: #{actor_forward.1} parent=1 // pred_check
      _
    $region15: #{actor_forward.1} parent=1 // pred_check_branch
      %43 = sbr.rel (0) target = $region17
    $region16: #{actor_forward.1} parent=1 // pred_region
      %45 = vsyncadd [#allocation5], 0
      %s46 = sshll.u32 %s3, 4
      %s47 = int_to_ptr.hbm [resolvable:$true] %s46
      %s48 = sshll.u32 [#allocation6], 4
      %s49 = int_to_ptr.vmem [resolvable:$true] %s48
      %54 = dma.hbm_to_vmem [thread:$0]  %s47, 4096, %s49, [#allocation5], 64, 64, 4
    $region17: #{actor_forward.1} parent=1 // pred_fallthru
      _
    // Predicated region
    $region18: #{actor_forward.1} parent=1 // pred_check
      _
    $region19: #{actor_forward.1} parent=1 // pred_check_branch
      %56 = sbr.rel (0) target = $region21
    $region20: #{actor_forward.1} parent=1 // pred_region
      _
    $region21: #{actor_forward.1} parent=1 // pred_fallthru
      _
    // Predicated region
    $region22: #{actor_forward.1} parent=1 // pred_check
      _
    $region23: #{actor_forward.1} parent=1 // pred_check_branch
      %58 = sbr.rel (0) target = $region25
    $region24: #{actor_forward.1} parent=1 // pred_region
      %60 = dma.done [#allocation3], 512
    $region25: #{actor_forward.1} parent=1 // pred_fallthru
      _
    // Predicated region
    $region26: #{actor_forward.1} parent=1 // pred_check
      _
    $region27: #{actor_forward.1} parent=1 // pred_check_branch
      %62 = sbr.rel (0) target = $region29
    $region28: #{actor_forward.1} parent=1 // pred_region
      %64 = dma.done [#allocation5], 8192
    $region29: #{actor_forward.1} parent=1 // pred_fallthru
      _
    // Predicated region
    $region30: #{actor_forward.1} parent=1 // pred_check
      _
    $region31: #{actor_forward.1} parent=1 // pred_check_branch
      %66 = sbr.rel (0) target = $region33
    $region32: #{actor_forward.1} parent=1 // pred_region
      %68 = dma.done [#allocation5], 4096
    $region33: #{actor_forward.1} parent=1 // pred_fallthru
      _
    %v70 = vld [vmem:[%s0] sm:$0xff]
    %v71 = vpack.c.bf16 %v70, %v70
    %v72 = vld [vmem:[#allocation2] sm:$0xf]
    %v73 = vld [vmem:[#allocation2 + $0x4] sm:$0xf]
    %v74 = vld [vmem:[#allocation2 + $0x8] sm:$0xf]
    %v75 = vld [vmem:[#allocation2 + $0xc] sm:$0xf]
    %v76 = vld [vmem:[#allocation2 + $0x10] sm:$0xf]
    %v77 = vld [vmem:[#allocation2 + $0x14] sm:$0xf]
    %v78 = vld [vmem:[#allocation2 + $0x18] sm:$0xf]
    %v79 = vld [vmem:[#allocation2 + $0x1c] sm:$0xf]
    %v88 = vunpack.c.l.b16 %v72
    %v89 = vunpack.c.l.b16 %v73
    %v90 = vunpack.c.l.b16 %v74
    %v91 = vunpack.c.l.b16 %v75
    %v92 = vunpack.c.l.b16 %v76
    %v93 = vunpack.c.l.b16 %v77
    %v94 = vunpack.c.l.b16 %v78
    %v95 = vunpack.c.l.b16 %v79
    %v96 = vpack.c.b16 %v89, %v88
    %v97 = vpack.c.b16 %v91, %v90
    %v98 = vpack.c.b16 %v93, %v92
    %v99 = vpack.c.b16 %v95, %v94
    %vm104 = vcmask 523264
    %v106 = vsel %vm104, %v71, 0
    %108 = vmatpush.bf16.msra.mxu0 0
    %109 = vmatpush.bf16.msra.mxu0 0
    %110 = vmatpush.bf16.msra.mxu0 0
    %111 = vmatpush.bf16.msra.mxu0 0
    %112 = vmatpush.bf16.msra.mxu0 %v99
    %113 = vmatpush.bf16.msra.mxu0 %v98
    %114 = vmatpush.bf16.msra.mxu0 %v97
    %115 = vmatpush.bf16.msra.mxu0 %v96
    %116 = vmatmul.bf16.gmra.mxu0 %v106
    %v117 = vpop.f32.mrf.mxu0
    %v118 = vadd.f32 0.0, %v117
    %v119 = vpop.f32.mrf.mxu0
    %120 = vdwg.mxu0
    %v121 = vmax.f32 %v118, 0.0
    %v122 = vpack.c.bf16 %v121, %v121
    %v123 = vld [vmem:[#allocation4] sm:$0xf]
    %v124 = vld [vmem:[#allocation4 + $0x20] sm:$0xf]
    %v125 = vld [vmem:[#allocation4 + $0x40] sm:$0xf]
    %v126 = vld [vmem:[#allocation4 + $0x60] sm:$0xf]
    %v127 = vld [vmem:[#allocation4 + $0x80] sm:$0xf]
    %v128 = vld [vmem:[#allocation4 + $0xa0] sm:$0xf]
    %v129 = vld [vmem:[#allocation4 + $0xc0] sm:$0xf]
    %v130 = vld [vmem:[#allocation4 + $0xe0] sm:$0xf]
    %v131 = vld [vmem:[#allocation4 + $0x100] sm:$0xf]
    %v132 = vld [vmem:[#allocation4 + $0x120] sm:$0xf]
    %v133 = vld [vmem:[#allocation4 + $0x140] sm:$0xf]
    %v134 = vld [vmem:[#allocation4 + $0x160] sm:$0xf]
    %v135 = vld [vmem:[#allocation4 + $0x180] sm:$0xf]
    %v136 = vld [vmem:[#allocation4 + $0x1a0] sm:$0xf]
    %v137 = vld [vmem:[#allocation4 + $0x1c0] sm:$0xf]
    %v138 = vld [vmem:[#allocation4 + $0x1e0] sm:$0xf]
    %v139 = vld [vmem:[%s4] sm:$0x1]
    %v141 = vperm.slane %v139, 0
    %v159 = vunpack.c.l.b16 %v123
    %v160 = vunpack.c.l.b16 %v124
    %v161 = vunpack.c.l.b16 %v125
    %v162 = vunpack.c.l.b16 %v126
    %v163 = vunpack.c.l.b16 %v127
    %v164 = vunpack.c.l.b16 %v128
    %v165 = vunpack.c.l.b16 %v129
    %v166 = vunpack.c.l.b16 %v130
    %v167 = vunpack.c.l.b16 %v131
    %v168 = vunpack.c.l.b16 %v132
    %v169 = vunpack.c.l.b16 %v133
    %v170 = vunpack.c.l.b16 %v134
    %v171 = vunpack.c.l.b16 %v135
    %v172 = vunpack.c.l.b16 %v136
    %v173 = vunpack.c.l.b16 %v137
    %v174 = vunpack.c.l.b16 %v138
    %v175 = vpack.c.b16 %v160, %v159
    %v176 = vpack.c.b16 %v162, %v161
    %v177 = vpack.c.b16 %v164, %v163
    %v178 = vpack.c.b16 %v166, %v165
    %v179 = vpack.c.b16 %v168, %v167
    %v180 = vpack.c.b16 %v170, %v169
    %v181 = vpack.c.b16 %v172, %v171
    %v182 = vpack.c.b16 %v174, %v173
    %191 = vmatpush.bf16.msra.mxu0 %v182
    %192 = vmatpush.bf16.msra.mxu0 %v181
    %193 = vmatpush.bf16.msra.mxu0 %v180
    %194 = vmatpush.bf16.msra.mxu0 %v179
    %195 = vmatpush.bf16.msra.mxu0 %v178
    %196 = vmatpush.bf16.msra.mxu0 %v177
    %197 = vmatpush.bf16.msra.mxu0 %v176
    %198 = vmatpush.bf16.msra.mxu0 %v175
    %199 = vmatmul.bf16.gmra.mxu0 %v122
    %v200 = vpop.f32.mrf.mxu0
    %v201 = vadd.f32 %v141, %v200
    %v202 = vpop.f32.mrf.mxu0
    %203 = vdwg.mxu0
    %v204 = vmax.f32 %v201, 0.0
    %v205 = vpack.c.bf16 %v204, %v204
    %v206 = vld [vmem:[#allocation4 + $0x4] sm:$0xff]
    %v207 = vld [vmem:[#allocation4 + $0xc] sm:$0xff]
    %v208 = vld [vmem:[#allocation4 + $0x24] sm:$0xff]
    %v209 = vld [vmem:[#allocation4 + $0x2c] sm:$0xff]
    %v210 = vld [vmem:[#allocation4 + $0x44] sm:$0xff]
    %v211 = vld [vmem:[#allocation4 + $0x4c] sm:$0xff]
    %v212 = vld [vmem:[#allocation4 + $0x64] sm:$0xff]
    %v213 = vld [vmem:[#allocation4 + $0x6c] sm:$0xff]
    %v214 = vld [vmem:[#allocation4 + $0x84] sm:$0xff]
    %v215 = vld [vmem:[#allocation4 + $0x8c] sm:$0xff]
    %v216 = vld [vmem:[#allocation4 + $0xa4] sm:$0xff]
    %v217 = vld [vmem:[#allocation4 + $0xac] sm:$0xff]
    %v218 = vld [vmem:[#allocation4 + $0xc4] sm:$0xff]
    %v219 = vld [vmem:[#allocation4 + $0xcc] sm:$0xff]
    %v220 = vld [vmem:[#allocation4 + $0xe4] sm:$0xff]
    %v221 = vld [vmem:[#allocation4 + $0xec] sm:$0xff]
    %v222 = vld [vmem:[#allocation4 + $0x104] sm:$0xff]
    %v223 = vld [vmem:[#allocation4 + $0x10c] sm:$0xff]
    %v224 = vld [vmem:[#allocation4 + $0x124] sm:$0xff]
    %v225 = vld [vmem:[#allocation4 + $0x12c] sm:$0xff]
    %v226 = vld [vmem:[#allocation4 + $0x144] sm:$0xff]
    %v227 = vld [vmem:[#allocation4 + $0x14c] sm:$0xff]
    %v228 = vld [vmem:[#allocation4 + $0x164] sm:$0xff]
    %v229 = vld [vmem:[#allocation4 + $0x16c] sm:$0xff]
    %v230 = vld [vmem:[#allocation4 + $0x184] sm:$0xff]
    %v231 = vld [vmem:[#allocation4 + $0x18c] sm:$0xff]
    %v232 = vld [vmem:[#allocation4 + $0x1a4] sm:$0xff]
    %v233 = vld [vmem:[#allocation4 + $0x1ac] sm:$0xff]
    %v234 = vld [vmem:[#allocation4 + $0x1c4] sm:$0xff]
    %v235 = vld [vmem:[#allocation4 + $0x1cc] sm:$0xff]
    %v236 = vld [vmem:[#allocation4 + $0x1e4] sm:$0xff]
    %v237 = vld [vmem:[#allocation4 + $0x1ec] sm:$0xff]
    %v238 = vld [vmem:[%s4 + $0x1] sm:$0xf]
    %v240 = vperm.slane %v238, 0
    %v241 = vperm.slane %v238, 1
    %v242 = vperm.slane %v238, 2
    %v243 = vperm.slane %v238, 3
    %v280 = vunpack.c.l.b16 %v206
    %v281 = vunpack.c.h.b16 %v206
    %v282 = vunpack.c.l.b16 %v207
    %v283 = vunpack.c.h.b16 %v207
    %v284 = vunpack.c.l.b16 %v208
    %v285 = vunpack.c.h.b16 %v208
    %v286 = vunpack.c.l.b16 %v209
    %v287 = vunpack.c.h.b16 %v209
    %v288 = vunpack.c.l.b16 %v210
    %v289 = vunpack.c.h.b16 %v210
    %v290 = vunpack.c.l.b16 %v211
    %v291 = vunpack.c.h.b16 %v211
    %v292 = vunpack.c.l.b16 %v212
    %v293 = vunpack.c.h.b16 %v212
    %v294 = vunpack.c.l.b16 %v213
    %v295 = vunpack.c.h.b16 %v213
    %v296 = vunpack.c.l.b16 %v214
    %v297 = vunpack.c.h.b16 %v214
    %v298 = vunpack.c.l.b16 %v215
    %v299 = vunpack.c.h.b16 %v215
    %v300 = vunpack.c.l.b16 %v216
    %v301 = vunpack.c.h.b16 %v216
    %v302 = vunpack.c.l.b16 %v217
    %v303 = vunpack.c.h.b16 %v217
    %v304 = vunpack.c.l.b16 %v218
    %v305 = vunpack.c.h.b16 %v218
    %v306 = vunpack.c.l.b16 %v219
    %v307 = vunpack.c.h.b16 %v219
    %v308 = vunpack.c.l.b16 %v220
    %v309 = vunpack.c.h.b16 %v220
    %v310 = vunpack.c.l.b16 %v221
    %v311 = vunpack.c.h.b16 %v221
    %v312 = vunpack.c.l.b16 %v222
    %v313 = vunpack.c.h.b16 %v222
    %v314 = vunpack.c.l.b16 %v223
    %v315 = vunpack.c.h.b16 %v223
    %v316 = vunpack.c.l.b16 %v224
    %v317 = vunpack.c.h.b16 %v224
    %v318 = vunpack.c.l.b16 %v225
    %v319 = vunpack.c.h.b16 %v225
    %v320 = vunpack.c.l.b16 %v226
    %v321 = vunpack.c.h.b16 %v226
    %v322 = vunpack.c.l.b16 %v227
    %v323 = vunpack.c.h.b16 %v227
    %v324 = vunpack.c.l.b16 %v228
    %v325 = vunpack.c.h.b16 %v228
    %v326 = vunpack.c.l.b16 %v229
    %v327 = vunpack.c.h.b16 %v229
    %v328 = vunpack.c.l.b16 %v230
    %v329 = vunpack.c.h.b16 %v230
    %v330 = vunpack.c.l.b16 %v231
    %v331 = vunpack.c.h.b16 %v231
    %v332 = vunpack.c.l.b16 %v232
    %v333 = vunpack.c.h.b16 %v232
    %v334 = vunpack.c.l.b16 %v233
    %v335 = vunpack.c.h.b16 %v233
    %v336 = vunpack.c.l.b16 %v234
    %v337 = vunpack.c.h.b16 %v234
    %v338 = vunpack.c.l.b16 %v235
    %v339 = vunpack.c.h.b16 %v235
    %v340 = vunpack.c.l.b16 %v236
    %v341 = vunpack.c.h.b16 %v236
    %v342 = vunpack.c.l.b16 %v237
    %v343 = vunpack.c.h.b16 %v237
    %v344 = vpack.c.b16 %v284, %v280
    %v345 = vpack.c.b16 %v285, %v281
    %v346 = vpack.c.b16 %v286, %v282
    %v347 = vpack.c.b16 %v287, %v283
    %v348 = vpack.c.b16 %v292, %v288
    %v349 = vpack.c.b16 %v293, %v289
    %v350 = vpack.c.b16 %v294, %v290
    %v351 = vpack.c.b16 %v295, %v291
    %v352 = vpack.c.b16 %v300, %v296
    %v353 = vpack.c.b16 %v301, %v297
    %v354 = vpack.c.b16 %v302, %v298
    %v355 = vpack.c.b16 %v303, %v299
    %v356 = vpack.c.b16 %v308, %v304
    %v357 = vpack.c.b16 %v309, %v305
    %v358 = vpack.c.b16 %v310, %v306
    %v359 = vpack.c.b16 %v311, %v307
    %v360 = vpack.c.b16 %v316, %v312
    %v361 = vpack.c.b16 %v317, %v313
    %v362 = vpack.c.b16 %v318, %v314
    %v363 = vpack.c.b16 %v319, %v315
    %v364 = vpack.c.b16 %v324, %v320
    %v365 = vpack.c.b16 %v325, %v321
    %v366 = vpack.c.b16 %v326, %v322
    %v367 = vpack.c.b16 %v327, %v323
    %v368 = vpack.c.b16 %v332, %v328
    %v369 = vpack.c.b16 %v333, %v329
    %v370 = vpack.c.b16 %v334, %v330
    %v371 = vpack.c.b16 %v335, %v331
    %v372 = vpack.c.b16 %v340, %v336
    %v373 = vpack.c.b16 %v341, %v337
    %v374 = vpack.c.b16 %v342, %v338
    %v375 = vpack.c.b16 %v343, %v339
    %408 = vmatpush.bf16.msra.mxu0 %v372
    %409 = vmatpush.bf16.msra.mxu0 %v368
    %410 = vmatpush.bf16.msra.mxu0 %v364
    %411 = vmatpush.bf16.msra.mxu0 %v360
    %412 = vmatpush.bf16.msra.mxu0 %v356
    %413 = vmatpush.bf16.msra.mxu0 %v352
    %414 = vmatpush.bf16.msra.mxu0 %v348
    %415 = vmatpush.bf16.msra.mxu0 %v344
    %416 = vmatmul.bf16.gmra.mxu0 %v205
    %v417 = vpop.f32.mrf.mxu0
    %v418 = vadd.f32 %v240, %v417
    %v419 = vpop.f32.mrf.mxu0
    %420 = vdwg.mxu0
    %421 = vmatpush.bf16.msra.mxu0 %v373
    %422 = vmatpush.bf16.msra.mxu0 %v369
    %423 = vmatpush.bf16.msra.mxu0 %v365
    %424 = vmatpush.bf16.msra.mxu0 %v361
    %425 = vmatpush.bf16.msra.mxu0 %v357
    %426 = vmatpush.bf16.msra.mxu0 %v353
    %427 = vmatpush.bf16.msra.mxu0 %v349
    %428 = vmatpush.bf16.msra.mxu0 %v345
    %429 = vmatmul.bf16.gmra.mxu0 %v205
    %v430 = vpop.f32.mrf.mxu0
    %v431 = vadd.f32 %v241, %v430
    %v432 = vpop.f32.mrf.mxu0
    %433 = vdwg.mxu0
    %434 = vmatpush.bf16.msra.mxu0 %v374
    %435 = vmatpush.bf16.msra.mxu0 %v370
    %436 = vmatpush.bf16.msra.mxu0 %v366
    %437 = vmatpush.bf16.msra.mxu0 %v362
    %438 = vmatpush.bf16.msra.mxu0 %v358
    %439 = vmatpush.bf16.msra.mxu0 %v354
    %440 = vmatpush.bf16.msra.mxu0 %v350
    %441 = vmatpush.bf16.msra.mxu0 %v346
    %442 = vmatmul.bf16.gmra.mxu0 %v205
    %v443 = vpop.f32.mrf.mxu0
    %v444 = vadd.f32 %v242, %v443
    %v445 = vpop.f32.mrf.mxu0
    %446 = vdwg.mxu0
    %447 = vmatpush.bf16.msra.mxu0 %v375
    %448 = vmatpush.bf16.msra.mxu0 %v371
    %449 = vmatpush.bf16.msra.mxu0 %v367
    %450 = vmatpush.bf16.msra.mxu0 %v363
    %451 = vmatpush.bf16.msra.mxu0 %v359
    %452 = vmatpush.bf16.msra.mxu0 %v355
    %453 = vmatpush.bf16.msra.mxu0 %v351
    %454 = vmatpush.bf16.msra.mxu0 %v347
    %455 = vmatmul.bf16.gmra.mxu0 %v205
    %v456 = vpop.f32.mrf.mxu0
    %v457 = vadd.f32 %v243, %v456
    %v458 = vpop.f32.mrf.mxu0
    %459 = vdwg.mxu0
    %v460 = vmax.f32 %v418, 0.0
    %v461 = vmax.f32 %v431, 0.0
    %v462 = vmax.f32 %v444, 0.0
    %v463 = vmax.f32 %v457, 0.0
    %v464 = vpack.c.bf16 %v460, %v460
    %v465 = vpack.c.bf16 %v461, %v461
    %v466 = vpack.c.bf16 %v462, %v462
    %v467 = vpack.c.bf16 %v463, %v463
    %v468 = vld [vmem:[#allocation6] sm:$0xf]
    %v469 = vld [vmem:[#allocation6 + $0x4] sm:$0xf]
    %v470 = vld [vmem:[#allocation6 + $0x8] sm:$0xf]
    %v471 = vld [vmem:[#allocation6 + $0xc] sm:$0xf]
    %v472 = vld [vmem:[#allocation6 + $0x10] sm:$0xf]
    %v473 = vld [vmem:[#allocation6 + $0x14] sm:$0xf]
    %v474 = vld [vmem:[#allocation6 + $0x18] sm:$0xf]
    %v475 = vld [vmem:[#allocation6 + $0x1c] sm:$0xf]
    %v476 = vld [vmem:[#allocation6 + $0x20] sm:$0xf]
    %v477 = vld [vmem:[#allocation6 + $0x24] sm:$0xf]
    %v478 = vld [vmem:[#allocation6 + $0x28] sm:$0xf]
    %v479 = vld [vmem:[#allocation6 + $0x2c] sm:$0xf]
    %v480 = vld [vmem:[#allocation6 + $0x30] sm:$0xf]
    %v481 = vld [vmem:[#allocation6 + $0x34] sm:$0xf]
    %v482 = vld [vmem:[#allocation6 + $0x38] sm:$0xf]
    %v483 = vld [vmem:[#allocation6 + $0x3c] sm:$0xf]
    %v484 = vld [vmem:[#allocation6 + $0x40] sm:$0xf]
    %v485 = vld [vmem:[#allocation6 + $0x44] sm:$0xf]
    %v486 = vld [vmem:[#allocation6 + $0x48] sm:$0xf]
    %v487 = vld [vmem:[#allocation6 + $0x4c] sm:$0xf]
    %v488 = vld [vmem:[#allocation6 + $0x50] sm:$0xf]
    %v489 = vld [vmem:[#allocation6 + $0x54] sm:$0xf]
    %v490 = vld [vmem:[#allocation6 + $0x58] sm:$0xf]
    %v491 = vld [vmem:[#allocation6 + $0x5c] sm:$0xf]
    %v492 = vld [vmem:[#allocation6 + $0x60] sm:$0xf]
    %v493 = vld [vmem:[#allocation6 + $0x64] sm:$0xf]
    %v494 = vld [vmem:[#allocation6 + $0x68] sm:$0xf]
    %v495 = vld [vmem:[#allocation6 + $0x6c] sm:$0xf]
    %v496 = vld [vmem:[#allocation6 + $0x70] sm:$0xf]
    %v497 = vld [vmem:[#allocation6 + $0x74] sm:$0xf]
    %v498 = vld [vmem:[#allocation6 + $0x78] sm:$0xf]
    %v499 = vld [vmem:[#allocation6 + $0x7c] sm:$0xf]
    %v500 = vld [vmem:[#allocation6 + $0x80] sm:$0xf]
    %v501 = vld [vmem:[#allocation6 + $0x84] sm:$0xf]
    %v502 = vld [vmem:[#allocation6 + $0x88] sm:$0xf]
    %v503 = vld [vmem:[#allocation6 + $0x8c] sm:$0xf]
    %v504 = vld [vmem:[#allocation6 + $0x90] sm:$0xf]
    %v505 = vld [vmem:[#allocation6 + $0x94] sm:$0xf]
    %v506 = vld [vmem:[#allocation6 + $0x98] sm:$0xf]
    %v507 = vld [vmem:[#allocation6 + $0x9c] sm:$0xf]
    %v508 = vld [vmem:[#allocation6 + $0xa0] sm:$0xf]
    %v509 = vld [vmem:[#allocation6 + $0xa4] sm:$0xf]
    %v510 = vld [vmem:[#allocation6 + $0xa8] sm:$0xf]
    %v511 = vld [vmem:[#allocation6 + $0xac] sm:$0xf]
    %v512 = vld [vmem:[#allocation6 + $0xb0] sm:$0xf]
    %v513 = vld [vmem:[#allocation6 + $0xb4] sm:$0xf]
    %v514 = vld [vmem:[#allocation6 + $0xb8] sm:$0xf]
    %v515 = vld [vmem:[#allocation6 + $0xbc] sm:$0xf]
    %v516 = vld [vmem:[#allocation6 + $0xc0] sm:$0xf]
    %v517 = vld [vmem:[#allocation6 + $0xc4] sm:$0xf]
    %v518 = vld [vmem:[#allocation6 + $0xc8] sm:$0xf]
    %v519 = vld [vmem:[#allocation6 + $0xcc] sm:$0xf]
    %v520 = vld [vmem:[#allocation6 + $0xd0] sm:$0xf]
    %v521 = vld [vmem:[#allocation6 + $0xd4] sm:$0xf]
    %v522 = vld [vmem:[#allocation6 + $0xd8] sm:$0xf]
    %v523 = vld [vmem:[#allocation6 + $0xdc] sm:$0xf]
    %v524 = vld [vmem:[#allocation6 + $0xe0] sm:$0xf]
    %v525 = vld [vmem:[#allocation6 + $0xe4] sm:$0xf]
    %v526 = vld [vmem:[#allocation6 + $0xe8] sm:$0xf]
    %v527 = vld [vmem:[#allocation6 + $0xec] sm:$0xf]
    %v528 = vld [vmem:[#allocation6 + $0xf0] sm:$0xf]
    %v529 = vld [vmem:[#allocation6 + $0xf4] sm:$0xf]
    %v530 = vld [vmem:[#allocation6 + $0xf8] sm:$0xf]
    %v531 = vld [vmem:[#allocation6 + $0xfc] sm:$0xf]
    %v532 = vld [vmem:[%s4 + $0x5] sm:$0x1]
    %v534 = vperm.slane %v532, 0
    %v600 = vunpack.c.l.b16 %v468
    %v601 = vunpack.c.l.b16 %v469
    %v602 = vunpack.c.l.b16 %v470
    %v603 = vunpack.c.l.b16 %v471
    %v604 = vunpack.c.l.b16 %v472
    %v605 = vunpack.c.l.b16 %v473
    %v606 = vunpack.c.l.b16 %v474
    %v607 = vunpack.c.l.b16 %v475
    %v608 = vunpack.c.l.b16 %v476
    %v609 = vunpack.c.l.b16 %v477
    %v610 = vunpack.c.l.b16 %v478
    %v611 = vunpack.c.l.b16 %v479
    %v612 = vunpack.c.l.b16 %v480
    %v613 = vunpack.c.l.b16 %v481
    %v614 = vunpack.c.l.b16 %v482
    %v615 = vunpack.c.l.b16 %v483
    %v616 = vunpack.c.l.b16 %v484
    %v617 = vunpack.c.l.b16 %v485
    %v618 = vunpack.c.l.b16 %v486
    %v619 = vunpack.c.l.b16 %v487
    %v620 = vunpack.c.l.b16 %v488
    %v621 = vunpack.c.l.b16 %v489
    %v622 = vunpack.c.l.b16 %v490
    %v623 = vunpack.c.l.b16 %v491
    %v624 = vunpack.c.l.b16 %v492
    %v625 = vunpack.c.l.b16 %v493
    %v626 = vunpack.c.l.b16 %v494
    %v627 = vunpack.c.l.b16 %v495
    %v628 = vunpack.c.l.b16 %v496
    %v629 = vunpack.c.l.b16 %v497
    %v630 = vunpack.c.l.b16 %v498
    %v631 = vunpack.c.l.b16 %v499
    %v632 = vunpack.c.l.b16 %v500
    %v633 = vunpack.c.l.b16 %v501
    %v634 = vunpack.c.l.b16 %v502
    %v635 = vunpack.c.l.b16 %v503
    %v636 = vunpack.c.l.b16 %v504
    %v637 = vunpack.c.l.b16 %v505
    %v638 = vunpack.c.l.b16 %v506
    %v639 = vunpack.c.l.b16 %v507
    %v640 = vunpack.c.l.b16 %v508
    %v641 = vunpack.c.l.b16 %v509
    %v642 = vunpack.c.l.b16 %v510
    %v643 = vunpack.c.l.b16 %v511
    %v644 = vunpack.c.l.b16 %v512
    %v645 = vunpack.c.l.b16 %v513
    %v646 = vunpack.c.l.b16 %v514
    %v647 = vunpack.c.l.b16 %v515
    %v648 = vunpack.c.l.b16 %v516
    %v649 = vunpack.c.l.b16 %v517
    %v650 = vunpack.c.l.b16 %v518
    %v651 = vunpack.c.l.b16 %v519
    %v652 = vunpack.c.l.b16 %v520
    %v653 = vunpack.c.l.b16 %v521
    %v654 = vunpack.c.l.b16 %v522
    %v655 = vunpack.c.l.b16 %v523
    %v656 = vunpack.c.l.b16 %v524
    %v657 = vunpack.c.l.b16 %v525
    %v658 = vunpack.c.l.b16 %v526
    %v659 = vunpack.c.l.b16 %v527
    %v660 = vunpack.c.l.b16 %v528
    %v661 = vunpack.c.l.b16 %v529
    %v662 = vunpack.c.l.b16 %v530
    %v663 = vunpack.c.l.b16 %v531
    %v664 = vpack.c.b16 %v601, %v600
    %v665 = vpack.c.b16 %v603, %v602
    %v666 = vpack.c.b16 %v605, %v604
    %v667 = vpack.c.b16 %v607, %v606
    %v668 = vpack.c.b16 %v609, %v608
    %v669 = vpack.c.b16 %v611, %v610
    %v670 = vpack.c.b16 %v613, %v612
    %v671 = vpack.c.b16 %v615, %v614
    %v672 = vpack.c.b16 %v617, %v616
    %v673 = vpack.c.b16 %v619, %v618
    %v674 = vpack.c.b16 %v621, %v620
    %v675 = vpack.c.b16 %v623, %v622
    %v676 = vpack.c.b16 %v625, %v624
    %v677 = vpack.c.b16 %v627, %v626
    %v678 = vpack.c.b16 %v629, %v628
    %v679 = vpack.c.b16 %v631, %v630
    %v680 = vpack.c.b16 %v633, %v632
    %v681 = vpack.c.b16 %v635, %v634
    %v682 = vpack.c.b16 %v637, %v636
    %v683 = vpack.c.b16 %v639, %v638
    %v684 = vpack.c.b16 %v641, %v640
    %v685 = vpack.c.b16 %v643, %v642
    %v686 = vpack.c.b16 %v645, %v644
    %v687 = vpack.c.b16 %v647, %v646
    %v688 = vpack.c.b16 %v649, %v648
    %v689 = vpack.c.b16 %v651, %v650
    %v690 = vpack.c.b16 %v653, %v652
    %v691 = vpack.c.b16 %v655, %v654
    %v692 = vpack.c.b16 %v657, %v656
    %v693 = vpack.c.b16 %v659, %v658
    %v694 = vpack.c.b16 %v661, %v660
    %v695 = vpack.c.b16 %v663, %v662
    %728 = vmatpush.bf16.msra.mxu0 %v671
    %729 = vmatpush.bf16.msra.mxu0 %v670
    %730 = vmatpush.bf16.msra.mxu0 %v669
    %731 = vmatpush.bf16.msra.mxu0 %v668
    %732 = vmatpush.bf16.msra.mxu0 %v667
    %733 = vmatpush.bf16.msra.mxu0 %v666
    %734 = vmatpush.bf16.msra.mxu0 %v665
    %735 = vmatpush.bf16.msra.mxu0 %v664
    %736 = vmatmul.bf16.gmra.mxu0 %v464
    %v737 = vpop.f32.mrf.mxu0
    %v738 = vadd.f32 %v534, %v737
    %v739 = vpop.f32.mrf.mxu0
    %740 = vdwg.mxu0
    %741 = vmatpush.bf16.msra.mxu0 %v679
    %742 = vmatpush.bf16.msra.mxu0 %v678
    %743 = vmatpush.bf16.msra.mxu0 %v677
    %744 = vmatpush.bf16.msra.mxu0 %v676
    %745 = vmatpush.bf16.msra.mxu0 %v675
    %746 = vmatpush.bf16.msra.mxu0 %v674
    %747 = vmatpush.bf16.msra.mxu0 %v673
    %748 = vmatpush.bf16.msra.mxu0 %v672
    %749 = vmatmul.bf16.gmra.mxu0 %v465
    %v750 = vpop.f32.mrf.mxu0
    %v751 = vadd.f32 %v738, %v750
    %v752 = vpop.f32.mrf.mxu0
    %753 = vdwg.mxu0
    %754 = vmatpush.bf16.msra.mxu0 %v687
    %755 = vmatpush.bf16.msra.mxu0 %v686
    %756 = vmatpush.bf16.msra.mxu0 %v685
    %757 = vmatpush.bf16.msra.mxu0 %v684
    %758 = vmatpush.bf16.msra.mxu0 %v683
    %759 = vmatpush.bf16.msra.mxu0 %v682
    %760 = vmatpush.bf16.msra.mxu0 %v681
    %761 = vmatpush.bf16.msra.mxu0 %v680
    %762 = vmatmul.bf16.gmra.mxu0 %v466
    %v763 = vpop.f32.mrf.mxu0
    %v764 = vadd.f32 %v751, %v763
    %v765 = vpop.f32.mrf.mxu0
    %766 = vdwg.mxu0
    %767 = vmatpush.bf16.msra.mxu0 %v695
    %768 = vmatpush.bf16.msra.mxu0 %v694
    %769 = vmatpush.bf16.msra.mxu0 %v693
    %770 = vmatpush.bf16.msra.mxu0 %v692
    %771 = vmatpush.bf16.msra.mxu0 %v691
    %772 = vmatpush.bf16.msra.mxu0 %v690
    %773 = vmatpush.bf16.msra.mxu0 %v689
    %774 = vmatpush.bf16.msra.mxu0 %v688
    %775 = vmatmul.bf16.gmra.mxu0 %v467
    %v776 = vpop.f32.mrf.mxu0
    %v777 = vadd.f32 %v764, %v776
    %v778 = vpop.f32.mrf.mxu0
    %779 = vdwg.mxu0
    %v780 = vmax.f32 %v777, 0.0
    %v781 = vpack.c.bf16 %v780, %v780
    %v782 = vld [vmem:[#allocation4 + $0x14] sm:$0xf]
    %v783 = vld [vmem:[#allocation4 + $0x34] sm:$0xf]
    %v784 = vld [vmem:[#allocation4 + $0x54] sm:$0xf]
    %v785 = vld [vmem:[#allocation4 + $0x74] sm:$0xf]
    %v786 = vld [vmem:[#allocation4 + $0x94] sm:$0xf]
    %v787 = vld [vmem:[#allocation4 + $0xb4] sm:$0xf]
    %v788 = vld [vmem:[#allocation4 + $0xd4] sm:$0xf]
    %v789 = vld [vmem:[#allocation4 + $0xf4] sm:$0xf]
    %v790 = vld [vmem:[#allocation4 + $0x114] sm:$0xf]
    %v791 = vld [vmem:[#allocation4 + $0x134] sm:$0xf]
    %v792 = vld [vmem:[#allocation4 + $0x154] sm:$0xf]
    %v793 = vld [vmem:[#allocation4 + $0x174] sm:$0xf]
    %v794 = vld [vmem:[#allocation4 + $0x194] sm:$0xf]
    %v795 = vld [vmem:[#allocation4 + $0x1b4] sm:$0xf]
    %v796 = vld [vmem:[#allocation4 + $0x1d4] sm:$0xf]
    %v797 = vld [vmem:[#allocation4 + $0x1f4] sm:$0xf]
    %v798 = vld [vmem:[%s4 + $0x6] sm:$0x1]
    %v800 = vperm.slane %v798, 0
    %v818 = vunpack.c.l.b16 %v782
    %v819 = vunpack.c.l.b16 %v783
    %v820 = vunpack.c.l.b16 %v784
    %v821 = vunpack.c.l.b16 %v785
    %v822 = vunpack.c.l.b16 %v786
    %v823 = vunpack.c.l.b16 %v787
    %v824 = vunpack.c.l.b16 %v788
    %v825 = vunpack.c.l.b16 %v789
    %v826 = vunpack.c.l.b16 %v790
    %v827 = vunpack.c.l.b16 %v791
    %v828 = vunpack.c.l.b16 %v792
    %v829 = vunpack.c.l.b16 %v793
    %v830 = vunpack.c.l.b16 %v794
    %v831 = vunpack.c.l.b16 %v795
    %v832 = vunpack.c.l.b16 %v796
    %v833 = vunpack.c.l.b16 %v797
    %v834 = vpack.c.b16 %v819, %v818
    %v835 = vpack.c.b16 %v821, %v820
    %v836 = vpack.c.b16 %v823, %v822
    %v837 = vpack.c.b16 %v825, %v824
    %v838 = vpack.c.b16 %v827, %v826
    %v839 = vpack.c.b16 %v829, %v828
    %v840 = vpack.c.b16 %v831, %v830
    %v841 = vpack.c.b16 %v833, %v832
    %850 = vmatpush.bf16.msra.mxu0 %v841
    %851 = vmatpush.bf16.msra.mxu0 %v840
    %852 = vmatpush.bf16.msra.mxu0 %v839
    %853 = vmatpush.bf16.msra.mxu0 %v838
    %854 = vmatpush.bf16.msra.mxu0 %v837
    %855 = vmatpush.bf16.msra.mxu0 %v836
    %856 = vmatpush.bf16.msra.mxu0 %v835
    %857 = vmatpush.bf16.msra.mxu0 %v834
    %858 = vmatmul.bf16.gmra.mxu0 %v781
    %v859 = vpop.f32.mrf.mxu0
    %v860 = vadd.f32 %v800, %v859
    %v861 = vpop.f32.mrf.mxu0
    %862 = vdwg.mxu0
    %v863 = vmax.f32 %v860, 0.0
    %v864 = vpack.c.bf16 %v863, %v863
    %v865 = vld [vmem:[#allocation4 + $0x18] sm:$0xff]
    %v866 = vld [vmem:[#allocation4 + $0x38] sm:$0xff]
    %v867 = vld [vmem:[#allocation4 + $0x58] sm:$0xff]
    %v868 = vld [vmem:[#allocation4 + $0x78] sm:$0xff]
    %v869 = vld [vmem:[#allocation4 + $0x98] sm:$0xff]
    %v870 = vld [vmem:[#allocation4 + $0xb8] sm:$0xff]
    %v871 = vld [vmem:[#allocation4 + $0xd8] sm:$0xff]
    %v872 = vld [vmem:[#allocation4 + $0xf8] sm:$0xff]
    %v873 = vld [vmem:[#allocation4 + $0x118] sm:$0xff]
    %v874 = vld [vmem:[#allocation4 + $0x138] sm:$0xff]
    %v875 = vld [vmem:[#allocation4 + $0x158] sm:$0xff]
    %v876 = vld [vmem:[#allocation4 + $0x178] sm:$0xff]
    %v877 = vld [vmem:[#allocation4 + $0x198] sm:$0xff]
    %v878 = vld [vmem:[#allocation4 + $0x1b8] sm:$0xff]
    %v879 = vld [vmem:[#allocation4 + $0x1d8] sm:$0xff]
    %v880 = vld [vmem:[#allocation4 + $0x1f8] sm:$0xff]
    %v881 = vld [vmem:[%s4 + $0x7] sm:$0x3]
    %v883 = vperm.slane %v881, 0
    %v884 = vperm.slane %v881, 1
    %v903 = vunpack.c.l.b16 %v865
    %v904 = vunpack.c.h.b16 %v865
    %v905 = vunpack.c.l.b16 %v866
    %v906 = vunpack.c.h.b16 %v866
    %v907 = vunpack.c.l.b16 %v867
    %v908 = vunpack.c.h.b16 %v867
    %v909 = vunpack.c.l.b16 %v868
    %v910 = vunpack.c.h.b16 %v868
    %v911 = vunpack.c.l.b16 %v869
    %v912 = vunpack.c.h.b16 %v869
    %v913 = vunpack.c.l.b16 %v870
    %v914 = vunpack.c.h.b16 %v870
    %v915 = vunpack.c.l.b16 %v871
    %v916 = vunpack.c.h.b16 %v871
    %v917 = vunpack.c.l.b16 %v872
    %v918 = vunpack.c.h.b16 %v872
    %v919 = vunpack.c.l.b16 %v873
    %v920 = vunpack.c.h.b16 %v873
    %v921 = vunpack.c.l.b16 %v874
    %v922 = vunpack.c.h.b16 %v874
    %v923 = vunpack.c.l.b16 %v875
    %v924 = vunpack.c.h.b16 %v875
    %v925 = vunpack.c.l.b16 %v876
    %v926 = vunpack.c.h.b16 %v876
    %v927 = vunpack.c.l.b16 %v877
    %v928 = vunpack.c.h.b16 %v877
    %v929 = vunpack.c.l.b16 %v878
    %v930 = vunpack.c.h.b16 %v878
    %v931 = vunpack.c.l.b16 %v879
    %v932 = vunpack.c.h.b16 %v879
    %v933 = vunpack.c.l.b16 %v880
    %v934 = vunpack.c.h.b16 %v880
    %v935 = vpack.c.b16 %v905, %v903
    %v936 = vpack.c.b16 %v906, %v904
    %v937 = vpack.c.b16 %v909, %v907
    %v938 = vpack.c.b16 %v910, %v908
    %v939 = vpack.c.b16 %v913, %v911
    %v940 = vpack.c.b16 %v914, %v912
    %v941 = vpack.c.b16 %v917, %v915
    %v942 = vpack.c.b16 %v918, %v916
    %v943 = vpack.c.b16 %v921, %v919
    %v944 = vpack.c.b16 %v922, %v920
    %v945 = vpack.c.b16 %v925, %v923
    %v946 = vpack.c.b16 %v926, %v924
    %v947 = vpack.c.b16 %v929, %v927
    %v948 = vpack.c.b16 %v930, %v928
    %v949 = vpack.c.b16 %v933, %v931
    %v950 = vpack.c.b16 %v934, %v932
    %967 = vmatpush.bf16.msra.mxu0 %v949
    %968 = vmatpush.bf16.msra.mxu0 %v947
    %969 = vmatpush.bf16.msra.mxu0 %v945
    %970 = vmatpush.bf16.msra.mxu0 %v943
    %971 = vmatpush.bf16.msra.mxu0 %v941
    %972 = vmatpush.bf16.msra.mxu0 %v939
    %973 = vmatpush.bf16.msra.mxu0 %v937
    %974 = vmatpush.bf16.msra.mxu0 %v935
    %975 = vmatmul.bf16.gmra.mxu0 %v864
    %v976 = vpop.f32.mrf.mxu0
    %v977 = vadd.f32 %v883, %v976
    %v978 = vpop.f32.mrf.mxu0
    %979 = vdwg.mxu0
    %980 = vmatpush.bf16.msra.mxu0 %v950
    %981 = vmatpush.bf16.msra.mxu0 %v948
    %982 = vmatpush.bf16.msra.mxu0 %v946
    %983 = vmatpush.bf16.msra.mxu0 %v944
    %984 = vmatpush.bf16.msra.mxu0 %v942
    %985 = vmatpush.bf16.msra.mxu0 %v940
    %986 = vmatpush.bf16.msra.mxu0 %v938
    %987 = vmatpush.bf16.msra.mxu0 %v936
    %988 = vmatmul.bf16.gmra.mxu0 %v864
    %v989 = vpop.f32.mrf.mxu0
    %v990 = vadd.f32 %v884, %v989
    %v991 = vpop.f32.mrf.mxu0
    %992 = vdwg.mxu0
    %993 = vst [vmem:[%s5] sm:$0xff] %v977
    %v994 = vtanh.pop %v990
    %v995 = vmul.f32 %v994, 1.442695
    %v996 = vpow.pop %v995
    %997 = vst [vmem:[%s6] sm:$0xff] %v996
    // Predicated region
    $region34: #{actor_forward.1} parent=1 // pred_check
      _
    $region35: #{actor_forward.1} parent=1 // pred_check_branch
      %999 = sbr.rel (0) target = $region37
    $region36: #{actor_forward.1} parent=1 // pred_region
      _
    $region37: #{actor_forward.1} parent=1 // pred_fallthru
      _
    // Predicated region
    $region38: #{actor_forward.1} parent=1 // pred_check
      _
    $region39: #{actor_forward.1} parent=1 // pred_check_branch
      %1001 = sbr.rel (0) target = $region41
    $region40: #{actor_forward.1} parent=1 // pred_region
      _
    $region41: #{actor_forward.1} parent=1 // pred_fallthru
      _
    // Predicated region
    $region42: #{actor_forward.1} parent=1 // pred_check
      _
    $region43: #{actor_forward.1} parent=1 // pred_check_branch
      %1003 = sbr.rel (0) target = $region45
    $region44: #{actor_forward.1} parent=1 // pred_region
      _
    $region45: #{actor_forward.1} parent=1 // pred_fallthru
      _
    // Predicated region
    $region46: #{actor_forward.1} parent=1 // pred_check
      _
    $region47: #{actor_forward.1} parent=1 // pred_check_branch
      %1005 = sbr.rel (0) target = $region49
    $region48: #{actor_forward.1} parent=1 // pred_region
      _
    $region49: #{actor_forward.1} parent=1 // pred_fallthru
      _
    %1006 = vsyncpa [#allocation3], 1
    %1007 = vsyncpa [#allocation5], 1

</llo_original>
